<compile_context>
chip_gen: v7x
topology: tpu7x:2x2x1
jax: 0.10.0
libtpu: 0.0.40
codegen_flags: <defaults>
</compile_context>

<pallas_src>
import jax
import jax.numpy as jnp
from jax.experimental import pallas as pl
from jax.experimental.pallas import tpu as pltpu

K = 6          # kernel_size
STRIDE = 2
PADDING = 1
LANE = 128


def _round_up(x, m):
    return (x + m - 1) // m * m


def _band_block(w_ref, row_start, rows, col_start, cols, l_out):
    """Build a (rows, cols) slice of the ConvTranspose1d scatter matrix in-kernel.

    W[i, o] = w[o + PADDING - i*STRIDE] when that tap index is in [0, K), else 0.
    Rows cover input positions [row_start, row_start+rows); columns cover output
    positions [col_start, col_start+cols); lane-padding columns (o >= l_out) are zeroed.
    Only K=6 selects on the VPU -- no O(L_in*L_out) HBM matrix.
    """
    i = jax.lax.broadcasted_iota(jnp.int32, (rows, cols), 0) + row_start
    o = jax.lax.broadcasted_iota(jnp.int32, (rows, cols), 1) + col_start
    k = o + PADDING - i * STRIDE
    col_ok = o < l_out
    wm = jnp.zeros((rows, cols), jnp.float32)
    for t in range(K):                       # static unroll over the 6 taps
        wm = wm + jnp.where((k == t) & col_ok, w_ref[t], 0.0)
    return wm


def _convt_kernel(y_ref, z_ref, w_ref, b_ref, o_ref):
    # y_ref: (TB, y_dim) VMEM, z_ref: (TB, z_dim) VMEM,
    # w_ref: (K,) SMEM, b_ref: (1,) SMEM, o_ref: (TB, TN) VMEM.
    y_dim = y_ref.shape[1]
    z_dim = z_ref.shape[1]
    tn = o_ref.shape[1]
    l_in = y_dim + z_dim
    l_out = (l_in - 1) * STRIDE - 2 * PADDING + K
    col0 = pl.program_id(1) * tn             # output-column offset of this tile

    # Fused concat: out = y @ W[:y_dim] + z @ W[y_dim:] + bias.
    wy = _band_block(w_ref, 0, y_dim, col0, tn, l_out)
    wz = _band_block(w_ref, y_dim, z_dim, col0, tn, l_out)
    acc = jnp.dot(y_ref[...], wy, preferred_element_type=jnp.float32)
    acc = acc + jnp.dot(z_ref[...], wz, preferred_element_type=jnp.float32)
    o_ref[...] = acc + b_ref[0]


def conv_transpose1d_1ch(y, z, w, b):
    """Single-channel ConvTranspose1d(k=6, s=2, p=1) applied to cat(y, z, axis=1).

    y: (B, y_dim) f32, z: (B, z_dim) f32, w: (K,) f32, b: () f32 -> (B, L_out) f32
    """
    B, y_dim = y.shape
    _, z_dim = z.shape
    l_in = y_dim + z_dim
    l_out = (l_in - 1) * STRIDE - 2 * PADDING + K

    # Lane-dense output: pad L_out to a multiple of 128; slice real columns at the end.
    l_out_pad = _round_up(l_out, LANE)
    if l_out_pad % 512 == 0:
        tn = 512
    elif l_out_pad % 256 == 0:
        tn = 256
    else:
        tn = LANE

    # Sublane-aligned batch tiling (pad B up; padded zero-rows are sliced off afterwards).
    if B <= 256:
        tb = _round_up(B, 8)
        b_pad = tb
    else:
        tb = 256
        b_pad = _round_up(B, tb)

    y_p = y.astype(jnp.float32)
    z_p = z.astype(jnp.float32)
    if b_pad != B:
        y_p = jnp.pad(y_p, ((0, b_pad - B), (0, 0)))
        z_p = jnp.pad(z_p, ((0, b_pad - B), (0, 0)))

    w_arr = jnp.reshape(w, (K,)).astype(jnp.float32)
    b_arr = jnp.reshape(b, (1,)).astype(jnp.float32)

    grid = (b_pad // tb, l_out_pad // tn)

    out = pl.pallas_call(
        _convt_kernel,
        out_shape=jax.ShapeDtypeStruct((b_pad, l_out_pad), jnp.float32),
        grid=grid,
        in_specs=[
            pl.BlockSpec((tb, y_dim), lambda i, j: (i, 0)),             # y tile (VMEM)
            pl.BlockSpec((tb, z_dim), lambda i, j: (i, 0)),             # z tile (VMEM)
            pl.BlockSpec(memory_space=pltpu.MemorySpace.SMEM),          # taps (K,)
            pl.BlockSpec(memory_space=pltpu.MemorySpace.SMEM),          # bias (1,)
        ],
        out_specs=pl.BlockSpec((tb, tn), lambda i, j: (i, j)),
        compiler_params=pltpu.CompilerParams(
            dimension_semantics=("parallel", "parallel"),
        ),
        cost_estimate=pl.CostEstimate(
            flops=2 * b_pad * l_in * l_out_pad,
            transcendentals=0,
            bytes_accessed=4 * (b_pad * l_in + b_pad * l_out_pad + K + 1),
        ),
    )(y_p, z_p, w_arr, b_arr)

    return out[:B, :l_out]


class GModelCNNPallas:
    """JAX/Pallas port of G_model_CNN's forward pass."""

    def __init__(self, z_dim, y_dim, key):
        self.input_dim = y_dim + z_dim
        # Deterministic init mimicking PyTorch's uniform(-1/sqrt(fan), 1/sqrt(fan)).
        kw, kb = jax.random.split(key)
        bound = 1.0 / jnp.sqrt(float(K))
        # ConvTranspose1d(1, 1, K) weight (1, 1, K) flattened to (K,); bias (1,) -> ().
        self.w = jax.random.uniform(kw, (K,), jnp.float32, -bound, bound)
        self.b = jax.random.uniform(kb, (), jnp.float32, -bound, bound)
        # TODO(synk): self.network (ConvTranspose1d/Conv1d stack + activation) is defined in
        # the reference __init__ but never used by its forward, so it is not implemented.

    def __call__(self, y, z):
        # cat -> unsqueeze(1) -> ConvTranspose1d -> squeeze(1); concat is fused into the kernel.
        return conv_transpose1d_1ch(y, z, self.w, self.b)


if __name__ == "__main__":
    key = jax.random.PRNGKey(0)
    k_params, k_y, k_z = jax.random.split(key, 3)

    B, y_dim, z_dim = 2, 8, 8
    model = GModelCNNPallas(z_dim=z_dim, y_dim=y_dim, key=k_params)

    y = jax.random.normal(k_y, (B, y_dim), dtype=jnp.float32)
    z = jax.random.normal(k_z, (B, z_dim), dtype=jnp.float32)

    out = model(y, z)
    out = jax.block_until_ready(out)

    L_in = y_dim + z_dim
    L_out = (L_in - 1) * STRIDE - 2 * PADDING + K
    assert out.shape == (B, L_out), out.shape
    assert out.dtype == jnp.float32

    # Sanity-check against a plain-JAX scatter-matrix reference of the same ConvTranspose1d.
    x = jnp.concatenate((y, z), axis=1)
    i = jnp.arange(L_in)[:, None]
    o = jnp.arange(L_out)[None, :]
    k = o + PADDING - i * STRIDE
    w_mat = jnp.where((k >= 0) & (k < K), model.w[jnp.clip(k, 0, K - 1)], 0.0)
    ref = x @ w_mat + model.b
    assert jnp.allclose(out, ref, atol=2e-2, rtol=2e-2), float(jnp.max(jnp.abs(out - ref)))

    print("KERNEL_OK")
</pallas_src>

<mosaic_0001>
module attributes {stable_mosaic.version = 11 : i64} {
  func.func @_convt_kernel(%arg0: i32, %arg1: i32, %arg2: memref<8x8xf32, #tpu.memory_space<vmem>>, %arg3: memref<8x8xf32, #tpu.memory_space<vmem>>, %arg4: memref<6xf32, #tpu.memory_space<smem>>, %arg5: memref<1xf32, #tpu.memory_space<smem>>, %arg6: memref<8x128xf32, #tpu.memory_space<vmem>>) attributes {dimension_semantics = [#tpu.dimension_semantics<parallel>, #tpu.dimension_semantics<parallel>], iteration_bounds = array<i64: 1, 1>, scalar_prefetch = 0 : i64, scratch_operands = 0 : i64, tpu.core_type = #tpu.core_type<tc>, window_params = [{transform_indices = @transform_0, window_bounds = array<i64: 8, 8>}, {transform_indices = @transform_1, window_bounds = array<i64: 8, 8>}, {transform_indices = @transform_2, window_bounds = array<i64: 6>}, {transform_indices = @transform_3, window_bounds = array<i64: 1>}, {transform_indices = @transform_4, window_bounds = array<i64: 8, 128>}]} {
    %c128_i32 = arith.constant 128 : i32
    %0 = arith.muli %arg1, %c128_i32 : i32
    %1 = tpu.iota {dimensions = array<i32: 0>} : vector<8x128xi32>
    %c0_i32 = arith.constant 0 : i32
    %2 = vector.broadcast %c0_i32 : i32 to vector<8x128xi32>
    %3 = arith.addi %1, %2 : vector<8x128xi32>
    %4 = tpu.iota {dimensions = array<i32: 1>} : vector<8x128xi32>
    %5 = vector.broadcast %0 : i32 to vector<8x128xi32>
    %6 = arith.addi %4, %5 : vector<8x128xi32>
    %c1_i32 = arith.constant 1 : i32
    %7 = vector.broadcast %c1_i32 : i32 to vector<8x128xi32>
    %8 = arith.addi %6, %7 : vector<8x128xi32>
    %c2_i32 = arith.constant 2 : i32
    %9 = vector.broadcast %c2_i32 : i32 to vector<8x128xi32>
    %10 = arith.muli %3, %9 : vector<8x128xi32>
    %11 = arith.subi %8, %10 : vector<8x128xi32>
    %c34_i32 = arith.constant 34 : i32
    %12 = vector.broadcast %c34_i32 : i32 to vector<8x128xi32>
    %13 = arith.cmpi slt, %6, %12 : vector<8x128xi32>
    %cst = arith.constant 0.000000e+00 : f32
    %14 = vector.broadcast %cst : f32 to vector<8x128xf32>
    %c0_i32_0 = arith.constant 0 : i32
    %15 = vector.broadcast %c0_i32_0 : i32 to vector<8x128xi32>
    %16 = arith.cmpi eq, %11, %15 : vector<8x128xi32>
    %17 = arith.andi %16, %13 : vector<8x128xi1>
    %c0 = arith.constant 0 : index
    %18 = memref.load %arg4[%c0] : memref<6xf32, #tpu.memory_space<smem>>
    %cst_1 = arith.constant 0.000000e+00 : f32
    %19 = vector.broadcast %18 : f32 to vector<8x128xf32>
    %20 = vector.broadcast %cst_1 : f32 to vector<8x128xf32>
    %21 = arith.select %17, %19, %20 : vector<8x128xi1>, vector<8x128xf32>
    %22 = arith.addf %14, %21 : vector<8x128xf32>
    %c1_i32_2 = arith.constant 1 : i32
    %23 = vector.broadcast %c1_i32_2 : i32 to vector<8x128xi32>
    %24 = arith.cmpi eq, %11, %23 : vector<8x128xi32>
    %25 = arith.andi %24, %13 : vector<8x128xi1>
    %c1 = arith.constant 1 : index
    %26 = memref.load %arg4[%c1] : memref<6xf32, #tpu.memory_space<smem>>
    %cst_3 = arith.constant 0.000000e+00 : f32
    %27 = vector.broadcast %26 : f32 to vector<8x128xf32>
    %28 = vector.broadcast %cst_3 : f32 to vector<8x128xf32>
    %29 = arith.select %25, %27, %28 : vector<8x128xi1>, vector<8x128xf32>
    %30 = arith.addf %22, %29 : vector<8x128xf32>
    %c2_i32_4 = arith.constant 2 : i32
    %31 = vector.broadcast %c2_i32_4 : i32 to vector<8x128xi32>
    %32 = arith.cmpi eq, %11, %31 : vector<8x128xi32>
    %33 = arith.andi %32, %13 : vector<8x128xi1>
    %c2 = arith.constant 2 : index
    %34 = memref.load %arg4[%c2] : memref<6xf32, #tpu.memory_space<smem>>
    %cst_5 = arith.constant 0.000000e+00 : f32
    %35 = vector.broadcast %34 : f32 to vector<8x128xf32>
    %36 = vector.broadcast %cst_5 : f32 to vector<8x128xf32>
    %37 = arith.select %33, %35, %36 : vector<8x128xi1>, vector<8x128xf32>
    %38 = arith.addf %30, %37 : vector<8x128xf32>
    %c3_i32 = arith.constant 3 : i32
    %39 = vector.broadcast %c3_i32 : i32 to vector<8x128xi32>
    %40 = arith.cmpi eq, %11, %39 : vector<8x128xi32>
    %41 = arith.andi %40, %13 : vector<8x128xi1>
    %c3 = arith.constant 3 : index
    %42 = memref.load %arg4[%c3] : memref<6xf32, #tpu.memory_space<smem>>
    %cst_6 = arith.constant 0.000000e+00 : f32
    %43 = vector.broadcast %42 : f32 to vector<8x128xf32>
    %44 = vector.broadcast %cst_6 : f32 to vector<8x128xf32>
    %45 = arith.select %41, %43, %44 : vector<8x128xi1>, vector<8x128xf32>
    %46 = arith.addf %38, %45 : vector<8x128xf32>
    %c4_i32 = arith.constant 4 : i32
    %47 = vector.broadcast %c4_i32 : i32 to vector<8x128xi32>
    %48 = arith.cmpi eq, %11, %47 : vector<8x128xi32>
    %49 = arith.andi %48, %13 : vector<8x128xi1>
    %c4 = arith.constant 4 : index
    %50 = memref.load %arg4[%c4] : memref<6xf32, #tpu.memory_space<smem>>
    %cst_7 = arith.constant 0.000000e+00 : f32
    %51 = vector.broadcast %50 : f32 to vector<8x128xf32>
    %52 = vector.broadcast %cst_7 : f32 to vector<8x128xf32>
    %53 = arith.select %49, %51, %52 : vector<8x128xi1>, vector<8x128xf32>
    %54 = arith.addf %46, %53 : vector<8x128xf32>
    %c5_i32 = arith.constant 5 : i32
    %55 = vector.broadcast %c5_i32 : i32 to vector<8x128xi32>
    %56 = arith.cmpi eq, %11, %55 : vector<8x128xi32>
    %57 = arith.andi %56, %13 : vector<8x128xi1>
    %c5 = arith.constant 5 : index
    %58 = memref.load %arg4[%c5] : memref<6xf32, #tpu.memory_space<smem>>
    %cst_8 = arith.constant 0.000000e+00 : f32
    %59 = vector.broadcast %58 : f32 to vector<8x128xf32>
    %60 = vector.broadcast %cst_8 : f32 to vector<8x128xf32>
    %61 = arith.select %57, %59, %60 : vector<8x128xi1>, vector<8x128xf32>
    %62 = arith.addf %54, %61 : vector<8x128xf32>
    %63 = tpu.iota {dimensions = array<i32: 0>} : vector<8x128xi32>
    %c8_i32 = arith.constant 8 : i32
    %64 = vector.broadcast %c8_i32 : i32 to vector<8x128xi32>
    %65 = arith.addi %63, %64 : vector<8x128xi32>
    %66 = tpu.iota {dimensions = array<i32: 1>} : vector<8x128xi32>
    %67 = vector.broadcast %0 : i32 to vector<8x128xi32>
    %68 = arith.addi %66, %67 : vector<8x128xi32>
    %c1_i32_9 = arith.constant 1 : i32
    %69 = vector.broadcast %c1_i32_9 : i32 to vector<8x128xi32>
    %70 = arith.addi %68, %69 : vector<8x128xi32>
    %c2_i32_10 = arith.constant 2 : i32
    %71 = vector.broadcast %c2_i32_10 : i32 to vector<8x128xi32>
    %72 = arith.muli %65, %71 : vector<8x128xi32>
    %73 = arith.subi %70, %72 : vector<8x128xi32>
    %c34_i32_11 = arith.constant 34 : i32
    %74 = vector.broadcast %c34_i32_11 : i32 to vector<8x128xi32>
    %75 = arith.cmpi slt, %68, %74 : vector<8x128xi32>
    %cst_12 = arith.constant 0.000000e+00 : f32
    %76 = vector.broadcast %cst_12 : f32 to vector<8x128xf32>
    %c0_i32_13 = arith.constant 0 : i32
    %77 = vector.broadcast %c0_i32_13 : i32 to vector<8x128xi32>
    %78 = arith.cmpi eq, %73, %77 : vector<8x128xi32>
    %79 = arith.andi %78, %75 : vector<8x128xi1>
    %c0_14 = arith.constant 0 : index
    %80 = memref.load %arg4[%c0_14] : memref<6xf32, #tpu.memory_space<smem>>
    %cst_15 = arith.constant 0.000000e+00 : f32
    %81 = vector.broadcast %80 : f32 to vector<8x128xf32>
    %82 = vector.broadcast %cst_15 : f32 to vector<8x128xf32>
    %83 = arith.select %79, %81, %82 : vector<8x128xi1>, vector<8x128xf32>
    %84 = arith.addf %76, %83 : vector<8x128xf32>
    %c1_i32_16 = arith.constant 1 : i32
    %85 = vector.broadcast %c1_i32_16 : i32 to vector<8x128xi32>
    %86 = arith.cmpi eq, %73, %85 : vector<8x128xi32>
    %87 = arith.andi %86, %75 : vector<8x128xi1>
    %c1_17 = arith.constant 1 : index
    %88 = memref.load %arg4[%c1_17] : memref<6xf32, #tpu.memory_space<smem>>
    %cst_18 = arith.constant 0.000000e+00 : f32
    %89 = vector.broadcast %88 : f32 to vector<8x128xf32>
    %90 = vector.broadcast %cst_18 : f32 to vector<8x128xf32>
    %91 = arith.select %87, %89, %90 : vector<8x128xi1>, vector<8x128xf32>
    %92 = arith.addf %84, %91 : vector<8x128xf32>
    %c2_i32_19 = arith.constant 2 : i32
    %93 = vector.broadcast %c2_i32_19 : i32 to vector<8x128xi32>
    %94 = arith.cmpi eq, %73, %93 : vector<8x128xi32>
    %95 = arith.andi %94, %75 : vector<8x128xi1>
    %c2_20 = arith.constant 2 : index
    %96 = memref.load %arg4[%c2_20] : memref<6xf32, #tpu.memory_space<smem>>
    %cst_21 = arith.constant 0.000000e+00 : f32
    %97 = vector.broadcast %96 : f32 to vector<8x128xf32>
    %98 = vector.broadcast %cst_21 : f32 to vector<8x128xf32>
    %99 = arith.select %95, %97, %98 : vector<8x128xi1>, vector<8x128xf32>
    %100 = arith.addf %92, %99 : vector<8x128xf32>
    %c3_i32_22 = arith.constant 3 : i32
    %101 = vector.broadcast %c3_i32_22 : i32 to vector<8x128xi32>
    %102 = arith.cmpi eq, %73, %101 : vector<8x128xi32>
    %103 = arith.andi %102, %75 : vector<8x128xi1>
    %c3_23 = arith.constant 3 : index
    %104 = memref.load %arg4[%c3_23] : memref<6xf32, #tpu.memory_space<smem>>
    %cst_24 = arith.constant 0.000000e+00 : f32
    %105 = vector.broadcast %104 : f32 to vector<8x128xf32>
    %106 = vector.broadcast %cst_24 : f32 to vector<8x128xf32>
    %107 = arith.select %103, %105, %106 : vector<8x128xi1>, vector<8x128xf32>
    %108 = arith.addf %100, %107 : vector<8x128xf32>
    %c4_i32_25 = arith.constant 4 : i32
    %109 = vector.broadcast %c4_i32_25 : i32 to vector<8x128xi32>
    %110 = arith.cmpi eq, %73, %109 : vector<8x128xi32>
    %111 = arith.andi %110, %75 : vector<8x128xi1>
    %c4_26 = arith.constant 4 : index
    %112 = memref.load %arg4[%c4_26] : memref<6xf32, #tpu.memory_space<smem>>
    %cst_27 = arith.constant 0.000000e+00 : f32
    %113 = vector.broadcast %112 : f32 to vector<8x128xf32>
    %114 = vector.broadcast %cst_27 : f32 to vector<8x128xf32>
    %115 = arith.select %111, %113, %114 : vector<8x128xi1>, vector<8x128xf32>
    %116 = arith.addf %108, %115 : vector<8x128xf32>
    %c5_i32_28 = arith.constant 5 : i32
    %117 = vector.broadcast %c5_i32_28 : i32 to vector<8x128xi32>
    %118 = arith.cmpi eq, %73, %117 : vector<8x128xi32>
    %119 = arith.andi %118, %75 : vector<8x128xi1>
    %c5_29 = arith.constant 5 : index
    %120 = memref.load %arg4[%c5_29] : memref<6xf32, #tpu.memory_space<smem>>
    %cst_30 = arith.constant 0.000000e+00 : f32
    %121 = vector.broadcast %120 : f32 to vector<8x128xf32>
    %122 = vector.broadcast %cst_30 : f32 to vector<8x128xf32>
    %123 = arith.select %119, %121, %122 : vector<8x128xi1>, vector<8x128xf32>
    %124 = arith.addf %116, %123 : vector<8x128xf32>
    %c0_31 = arith.constant 0 : index
    %c0_32 = arith.constant 0 : index
    %125 = vector.load %arg2[%c0_31, %c0_32] : memref<8x8xf32, #tpu.memory_space<vmem>>, vector<8x8xf32>
    %cst_33 = arith.constant dense<0.000000e+00> : vector<8x128xf32>
    %126 = tpu.matmul %125, %62, %cst_33 {dimension_numbers = #tpu.dot_dimension_numbers<[1], [0], [0], [1], [0, 0, 1, 1], [], []>} : vector<8x8xf32>, vector<8x128xf32>, vector<8x128xf32> -> vector<8x128xf32>
    %c0_34 = arith.constant 0 : index
    %c0_35 = arith.constant 0 : index
    %127 = vector.load %arg3[%c0_34, %c0_35] : memref<8x8xf32, #tpu.memory_space<vmem>>, vector<8x8xf32>
    %cst_36 = arith.constant dense<0.000000e+00> : vector<8x128xf32>
    %128 = tpu.matmul %127, %124, %cst_36 {dimension_numbers = #tpu.dot_dimension_numbers<[1], [0], [0], [1], [0, 0, 1, 1], [], []>} : vector<8x8xf32>, vector<8x128xf32>, vector<8x128xf32> -> vector<8x128xf32>
    %129 = arith.addf %126, %128 : vector<8x128xf32>
    %c0_37 = arith.constant 0 : index
    %130 = memref.load %arg5[%c0_37] : memref<1xf32, #tpu.memory_space<smem>>
    %131 = vector.broadcast %130 : f32 to vector<8x128xf32>
    %132 = arith.addf %129, %131 : vector<8x128xf32>
    %c0_38 = arith.constant 0 : index
    %c0_39 = arith.constant 0 : index
    %133 = vector.load %arg6[%c0_38, %c0_39] : memref<8x128xf32, #tpu.memory_space<vmem>>, vector<8x128xf32>
    tpu.vector_store %arg6[%c0_38, %c0_39], %132 {strides = array<i32>} : memref<8x128xf32, #tpu.memory_space<vmem>>, vector<8x128xf32>,
    return
  }
  func.func @transform_0(%arg0: i32, %arg1: i32) -> (i32, i32) {
    %c0_i32 = arith.constant 0 : i32
    %c0_i32_0 = arith.constant 0 : i32
    return %arg0, %c0_i32 : i32, i32
  }
  func.func @transform_1(%arg0: i32, %arg1: i32) -> (i32, i32) {
    %c0_i32 = arith.constant 0 : i32
    %c0_i32_0 = arith.constant 0 : i32
    return %arg0, %c0_i32 : i32, i32
  }
  func.func @transform_2(%arg0: i32, %arg1: i32) -> i32 {
    %c0_i32 = arith.constant 0 : i32
    %c0_i32_0 = arith.constant 0 : i32
    return %c0_i32 : i32
  }
  func.func @transform_3(%arg0: i32, %arg1: i32) -> i32 {
    %c0_i32 = arith.constant 0 : i32
    %c0_i32_0 = arith.constant 0 : i32
    return %c0_i32 : i32
  }
  func.func @transform_4(%arg0: i32, %arg1: i32) -> (i32, i32) {
    %c0_i32 = arith.constant 0 : i32
    return %arg0, %arg1 : i32, i32
  }
}

</mosaic_0001>

<llo_original>
// kernel: tpu_custom_call.1
$region0: #{tpu_custom_call.1}
  #allocation0 [shape = 'u32[]', space=smem, size = 0x4, offset = 0x4, fixed_abs, tag = 'smem constant byte address 0x4 - core index']
  #allocation1 [shape = 'u32[144,128]{1,0:T(1,128)}', space=vmem, size = 0x12000, scoped, tag = 'internal scratch']
  #allocation2 [shape = 'f32[1]{0:T(128)S(6)}', space=smem, size = 0x200, scoped, tag = 'scoped memory for tpu_custom_call.1']
  %s0 = inlined_call_operand.hbm [shape: f32[8,8], index: 0, kind: input, shape index: {}]
  %s1 = inlined_call_operand.hbm [shape: f32[8,8], index: 1, kind: input, shape index: {}]
  %s2 = inlined_call_operand.vmem [shape: f32[6], index: 2, kind: input, shape index: {}]
  %s3 = inlined_call_operand.<no memory space> [shape: f32[1], index: 3, kind: input, shape index: {}]
  %s4 = inlined_call_operand.hbm [shape: f32[8,128], index: 4, kind: output, shape index: {}]
  %s5 = sld [smem:[#allocation0]]
  $region38: #{tpu_custom_call.1} parent=0
    _
  %s7 = ssub.s32 1, %s5
  %s8 = scalar_select 0, %s7, %s5
  %9 = sst [smem:[#allocation2]] %s3
  $region1: #{tpu_custom_call.1} parent=0
    #allocation3 [shape = 'u8[4096]{0}', space=vmem, size = 0x1000, scoped, tag = 'input window, operand 0, single buffered']
    #allocation4 [shape = 's32[1]{0}', space=sflag, size = 0x4, scoped, tag = 'scoped memory for tpu_custom_call.1']
    #allocation5 [shape = 's32[1]{0}', space=sflag, size = 0x4, scoped, tag = 'scoped memory for tpu_custom_call.1']
    #allocation6 [shape = 's32[1]{0}', space=sflag, size = 0x4, scoped, tag = 'scoped memory for tpu_custom_call.1']
    #allocation7 [shape = 'u8[4096]{0}', space=vmem, size = 0x1000, scoped, tag = 'input window, operand 1, single buffered']
    #allocation8 [shape = 's32[1]{0}', space=sflag, size = 0x4, scoped, tag = 'scoped memory for tpu_custom_call.1']
    #allocation9 [shape = 'u8[512]{0}', space=smem, size = 0x200, scoped, tag = 'input window, operand 2, single buffered']
    #allocation10 [shape = 'u8[4096]{0}', space=vmem, size = 0x1000, scoped, tag = 'output window, operand 0, single buffered']
    %10 = vsyncpa [#allocation4], 0
    %11 = vsyncpa [#allocation8], 0
    %12 = vsyncpa [#allocation6], 0
    %13 = vsyncpa [#allocation5], 0
    // Predicated region
    $region2: #{tpu_custom_call.1} parent=1 // pred_check
      _
    $region3: #{tpu_custom_call.1} parent=1 // pred_check_branch
      %15 = sbr.rel (0) target = $region5
    $region4: #{tpu_custom_call.1} parent=1 // pred_region
      %s17 = ssub.s32 128, 128
      %18 = vsyncadd [#allocation4], %s17
      %s20 = sshll.u32 [#allocation3], 4
      %s21 = int_to_ptr.vmem [resolvable:$true] %s20
      %23 = dma.hbm_to_vmem [thread:$0]  %s0, 128, %s21, [#allocation4]
    $region5: #{tpu_custom_call.1} parent=1 // pred_fallthru
      _
    // Predicated region
    $region6: #{tpu_custom_call.1} parent=1 // pred_check
      _
    $region7: #{tpu_custom_call.1} parent=1 // pred_check_branch
      %25 = sbr.rel (0) target = $region9
    $region8: #{tpu_custom_call.1} parent=1 // pred_region
      %s27 = ssub.s32 128, 128
      %28 = vsyncadd [#allocation8], %s27
      %s30 = sshll.u32 [#allocation7], 4
      %s31 = int_to_ptr.vmem [resolvable:$true] %s30
      %33 = dma.hbm_to_vmem [thread:$0]  %s1, 128, %s31, [#allocation8]
    $region9: #{tpu_custom_call.1} parent=1 // pred_fallthru
      _
    // Predicated region
    $region10: #{tpu_custom_call.1} parent=1 // pred_check
      _
    $region11: #{tpu_custom_call.1} parent=1 // pred_check_branch
      %35 = sbr.rel (0) target = $region13
    $region12: #{tpu_custom_call.1} parent=1 // pred_region
      %s37 = ssub.s32 16, 16
      %38 = vsyncadd [#allocation6], %s37
      %s40 = sshll.u32 %s2, 4
      %s41 = int_to_ptr.vmem [resolvable:$true] %s40
      %43 = dma.vmem_to_smem %s41, 16, [#allocation9], [#allocation6]
    $region13: #{tpu_custom_call.1} parent=1 // pred_fallthru
      _
    // Predicated region
    $region14: #{tpu_custom_call.1} parent=1 // pred_check
      _
    $region15: #{tpu_custom_call.1} parent=1 // pred_check_branch
      %45 = sbr.rel (0) target = $region17
    $region16: #{tpu_custom_call.1} parent=1 // pred_region
      _
    $region17: #{tpu_custom_call.1} parent=1 // pred_fallthru
      _
    // Predicated region
    $region18: #{tpu_custom_call.1} parent=1 // pred_check
      _
    $region19: #{tpu_custom_call.1} parent=1 // pred_check_branch
      %47 = sbr.rel (0) target = $region21
    $region20: #{tpu_custom_call.1} parent=1 // pred_region
      %48 = dma.done [#allocation4], 128
    $region21: #{tpu_custom_call.1} parent=1 // pred_fallthru
      _
    // Predicated region
    $region22: #{tpu_custom_call.1} parent=1 // pred_check
      _
    $region23: #{tpu_custom_call.1} parent=1 // pred_check_branch
      %50 = sbr.rel (0) target = $region25
    $region24: #{tpu_custom_call.1} parent=1 // pred_region
      %51 = dma.done [#allocation8], 128
    $region25: #{tpu_custom_call.1} parent=1 // pred_fallthru
      _
    // Predicated region
    $region26: #{tpu_custom_call.1} parent=1 // pred_check
      _
    $region27: #{tpu_custom_call.1} parent=1 // pred_check_branch
      %53 = sbr.rel (0) target = $region29
    $region28: #{tpu_custom_call.1} parent=1 // pred_region
      %54 = dma.done [#allocation6], 16
    $region29: #{tpu_custom_call.1} parent=1 // pred_fallthru
      _
    %55 = sfence
    %s56 = smul.u32 0, 128
    %v57 = vlaneseq
    %v58 = vshrl.u32 %v57, 7
    %v59 = vlaneseq
    %v60 = vand.u32 %v59, 127
    %v61 = vstv %s56
    %v62 = vadd.s32 %v60, %v61
    %v63 = vadd.s32 %v62, 1
    %v64 = vmul.u32 %v58, 2
    %v65 = vsub.s32 %v63, %v64
    %vm66 = vcmp.lt.s32.totalorder %v62, 34
    %vm67 = vcmp.eq.s32.totalorder %v65, 0
    %vm68 = vmand %vm67, %vm66
    %s69 = sld [smem:[#allocation9]]
    %v70 = vstv %s69
    %v71 = vsel %vm68, %v70, 0.0
    %v72 = vadd.f32 %v71, 0.0
    %vm73 = vcmp.eq.s32.totalorder %v65, 1
    %vm74 = vmand %vm73, %vm66
    %s75 = sld [smem:[#allocation9 + $0x1]]
    %v76 = vstv %s75
    %v77 = vsel %vm74, %v76, 0.0
    %v78 = vadd.f32 %v72, %v77
    %vm79 = vcmp.eq.s32.totalorder %v65, 2
    %vm80 = vmand %vm79, %vm66
    %s81 = sld [smem:[#allocation9 + $0x2]]
    %v82 = vstv %s81
    %v83 = vsel %vm80, %v82, 0.0
    %v84 = vadd.f32 %v78, %v83
    %vm85 = vcmp.eq.s32.totalorder %v65, 3
    %vm86 = vmand %vm85, %vm66
    %s87 = sld [smem:[#allocation9 + $0x3]]
    %v88 = vstv %s87
    %v89 = vsel %vm86, %v88, 0.0
    %v90 = vadd.f32 %v84, %v89
    %vm91 = vcmp.eq.s32.totalorder %v65, 4
    %vm92 = vmand %vm91, %vm66
    %s93 = sld [smem:[#allocation9 + $0x4]]
    %v94 = vstv %s93
    %v95 = vsel %vm92, %v94, 0.0
    %v96 = vadd.f32 %v90, %v95
    %vm97 = vcmp.eq.s32.totalorder %v65, 5
    %vm98 = vmand %vm97, %vm66
    %s99 = sld [smem:[#allocation9 + $0x5]]
    %v100 = vstv %s99
    %v101 = vsel %vm98, %v100, 0.0
    %v102 = vadd.f32 %v96, %v101
    %v103 = vadd.s32 %v58, 8
    %v104 = vmul.u32 %v103, 2
    %v105 = vsub.s32 %v63, %v104
    %vm106 = vcmp.eq.s32.totalorder %v105, 0
    %vm107 = vmand %vm106, %vm66
    %v108 = vsel %vm107, %v70, 0.0
    %v109 = vadd.f32 %v108, 0.0
    %vm110 = vcmp.eq.s32.totalorder %v105, 1
    %vm111 = vmand %vm110, %vm66
    %v112 = vsel %vm111, %v76, 0.0
    %v113 = vadd.f32 %v109, %v112
    %vm114 = vcmp.eq.s32.totalorder %v105, 2
    %vm115 = vmand %vm114, %vm66
    %v116 = vsel %vm115, %v82, 0.0
    %v117 = vadd.f32 %v113, %v116
    %vm118 = vcmp.eq.s32.totalorder %v105, 3
    %vm119 = vmand %vm118, %vm66
    %v120 = vsel %vm119, %v88, 0.0
    %v121 = vadd.f32 %v117, %v120
    %vm122 = vcmp.eq.s32.totalorder %v105, 4
    %vm123 = vmand %vm122, %vm66
    %v124 = vsel %vm123, %v94, 0.0
    %v125 = vadd.f32 %v121, %v124
    %vm126 = vcmp.eq.s32.totalorder %v105, 5
    %vm127 = vmand %vm126, %vm66
    %v128 = vsel %vm127, %v100, 0.0
    %v129 = vadd.f32 %v125, %v128
    %v130 = vld [vmem:[#allocation3] sm:$0xff]
    %v131 = vld [vmem:[#allocation7] sm:$0xff]
    %vm132 = vcmask 64512
    %v134 = vsel %vm132, %v131, 0
    %136 = vmatprep.subr.mxu0 0.0
    %137 = vmatpush1.msra.mxu0 %v129
    %138 = vmatprep.subr.mxu0 0.0
    %139 = vmatpush1.msra.mxu0 0.0
    %140 = vmatprep.subr.mxu0 0.0
    %141 = vmatpush1.msra.mxu0 0.0
    %142 = vmatprep.subr.mxu0 0.0
    %143 = vmatpush1.msra.mxu0 0.0
    %144 = vmatprep.subr.mxu0 0.0
    %145 = vmatpush1.msra.mxu0 0.0
    %146 = vmatprep.subr.mxu0 0.0
    %147 = vmatpush1.msra.mxu0 0.0
    %148 = vmatprep.subr.mxu0 0.0
    %149 = vmatpush1.msra.mxu0 0.0
    %150 = vmatprep.subr.mxu0 0.0
    %151 = vmatpush1.msra.mxu0 0.0
    %152 = vmatprep.subr.mxu0 0.0
    %153 = vmatpush1.msra.mxu0 0.0
    %154 = vmatprep.subr.mxu0 0.0
    %155 = vmatpush1.msra.mxu0 0.0
    %156 = vmatprep.subr.mxu0 0.0
    %157 = vmatpush1.msra.mxu0 0.0
    %158 = vmatprep.subr.mxu0 0.0
    %159 = vmatpush1.msra.mxu0 0.0
    %160 = vmatprep.subr.mxu0 0.0
    %161 = vmatpush1.msra.mxu0 0.0
    %162 = vmatprep.subr.mxu0 0.0
    %163 = vmatpush1.msra.mxu0 0.0
    %164 = vmatprep.subr.mxu0 0.0
    %165 = vmatpush1.msra.mxu0 0.0
    %166 = vmatprep.subr.mxu0 0.0
    %167 = vmatpush1.msra.mxu0 0.0
    %168 = vmatprep.subr.mxu0 0.0
    %169 = vmatpush1.msra.mxu0 0.0
    %170 = vmatprep.subr.mxu0 0.0
    %171 = vmatpush1.msra.mxu0 0.0
    %172 = vmatprep.subr.mxu0 0.0
    %173 = vmatpush1.msra.mxu0 0.0
    %174 = vmatprep.subr.mxu0 0.0
    %175 = vmatpush1.msra.mxu0 0.0
    %176 = vmatprep.subr.mxu0 0.0
    %177 = vmatpush1.msra.mxu0 0.0
    %178 = vmatprep.subr.mxu0 0.0
    %179 = vmatpush1.msra.mxu0 0.0
    %180 = vmatprep.subr.mxu0 0.0
    %181 = vmatpush1.msra.mxu0 0.0
    %182 = vmatprep.subr.mxu0 0.0
    %183 = vmatpush1.msra.mxu0 0.0
    %184 = vmatprep.subr.mxu0 0.0
    %185 = vmatpush1.msra.mxu0 0.0
    %186 = vmatprep.subr.mxu0 0.0
    %187 = vmatpush1.msra.mxu0 0.0
    %188 = vmatprep.subr.mxu0 0.0
    %189 = vmatpush1.msra.mxu0 0.0
    %190 = vmatprep.subr.mxu0 0.0
    %191 = vmatpush1.msra.mxu0 0.0
    %192 = vmatprep.subr.mxu0 0.0
    %193 = vmatpush1.msra.mxu0 0.0
    %194 = vmatprep.subr.mxu0 0.0
    %195 = vmatpush1.msra.mxu0 0.0
    %196 = vmatprep.subr.mxu0 0.0
    %197 = vmatpush1.msra.mxu0 0.0
    %198 = vmatprep.subr.mxu0 0.0
    %199 = vmatpush1.msra.mxu0 0.0
    %200 = vmatprep.mubr.f32.mxu0 0.0
    %201 = vmatmul.mubr.f32.gmra.mrb[0].mxu0 %v134
    %v202 = vpop.f32.mrb[0].mxu0
    %v203 = vadd.f32 0.0, %v202
    %v204 = vpop.f32.mrb[0].mxu0
    %205 = vdwg.mxu0
    %v207 = vsel %vm132, %v130, 0
    %209 = vmatprep.subr.mxu0 0.0
    %210 = vmatpush1.msra.mxu0 %v102
    %211 = vmatprep.subr.mxu0 0.0
    %212 = vmatpush1.msra.mxu0 0.0
    %213 = vmatprep.subr.mxu0 0.0
    %214 = vmatpush1.msra.mxu0 0.0
    %215 = vmatprep.subr.mxu0 0.0
    %216 = vmatpush1.msra.mxu0 0.0
    %217 = vmatprep.subr.mxu0 0.0
    %218 = vmatpush1.msra.mxu0 0.0
    %219 = vmatprep.subr.mxu0 0.0
    %220 = vmatpush1.msra.mxu0 0.0
    %221 = vmatprep.subr.mxu0 0.0
    %222 = vmatpush1.msra.mxu0 0.0
    %223 = vmatprep.subr.mxu0 0.0
    %224 = vmatpush1.msra.mxu0 0.0
    %225 = vmatprep.subr.mxu0 0.0
    %226 = vmatpush1.msra.mxu0 0.0
    %227 = vmatprep.subr.mxu0 0.0
    %228 = vmatpush1.msra.mxu0 0.0
    %229 = vmatprep.subr.mxu0 0.0
    %230 = vmatpush1.msra.mxu0 0.0
    %231 = vmatprep.subr.mxu0 0.0
    %232 = vmatpush1.msra.mxu0 0.0
    %233 = vmatprep.subr.mxu0 0.0
    %234 = vmatpush1.msra.mxu0 0.0
    %235 = vmatprep.subr.mxu0 0.0
    %236 = vmatpush1.msra.mxu0 0.0
    %237 = vmatprep.subr.mxu0 0.0
    %238 = vmatpush1.msra.mxu0 0.0
    %239 = vmatprep.subr.mxu0 0.0
    %240 = vmatpush1.msra.mxu0 0.0
    %241 = vmatprep.subr.mxu0 0.0
    %242 = vmatpush1.msra.mxu0 0.0
    %243 = vmatprep.subr.mxu0 0.0
    %244 = vmatpush1.msra.mxu0 0.0
    %245 = vmatprep.subr.mxu0 0.0
    %246 = vmatpush1.msra.mxu0 0.0
    %247 = vmatprep.subr.mxu0 0.0
    %248 = vmatpush1.msra.mxu0 0.0
    %249 = vmatprep.subr.mxu0 0.0
    %250 = vmatpush1.msra.mxu0 0.0
    %251 = vmatprep.subr.mxu0 0.0
    %252 = vmatpush1.msra.mxu0 0.0
    %253 = vmatprep.subr.mxu0 0.0
    %254 = vmatpush1.msra.mxu0 0.0
    %255 = vmatprep.subr.mxu0 0.0
    %256 = vmatpush1.msra.mxu0 0.0
    %257 = vmatprep.subr.mxu0 0.0
    %258 = vmatpush1.msra.mxu0 0.0
    %259 = vmatprep.subr.mxu0 0.0
    %260 = vmatpush1.msra.mxu0 0.0
    %261 = vmatprep.subr.mxu0 0.0
    %262 = vmatpush1.msra.mxu0 0.0
    %263 = vmatprep.subr.mxu0 0.0
    %264 = vmatpush1.msra.mxu0 0.0
    %265 = vmatprep.subr.mxu0 0.0
    %266 = vmatpush1.msra.mxu0 0.0
    %267 = vmatprep.subr.mxu0 0.0
    %268 = vmatpush1.msra.mxu0 0.0
    %269 = vmatprep.subr.mxu0 0.0
    %270 = vmatpush1.msra.mxu0 0.0
    %271 = vmatprep.subr.mxu0 0.0
    %272 = vmatpush1.msra.mxu0 0.0
    %273 = vmatprep.mubr.f32.mxu0 0.0
    %274 = vmatmul.mubr.f32.gmra.mrb[0].mxu0 %v207
    %v275 = vpop.f32.mrb[0].mxu0
    %v276 = vadd.f32 %v203, %v275
    %v277 = vpop.f32.mrb[0].mxu0
    %278 = vdwg.mxu0
    %s279 = sld [smem:[#allocation2]]
    %v280 = vstv %s279
    %v281 = vadd.f32 %v276, %v280
    %282 = vst [vmem:[#allocation10] sm:$0xff] %v281
    // Predicated region
    $region30: #{tpu_custom_call.1} parent=1 // pred_check
      _
    $region31: #{tpu_custom_call.1} parent=1 // pred_check_branch
      %284 = sbr.rel (0) target = $region33
    $region32: #{tpu_custom_call.1} parent=1 // pred_region
      %s286 = ssub.s32 128, 128
      %287 = vsyncadd [#allocation5], %s286
      %s289 = sshll.u32 [#allocation10], 4
      %s290 = int_to_ptr.vmem [resolvable:$true] %s289
      %292 = dma.vmem_to_hbm [thread:$0]  %s290, 128, %s4, [#allocation5]
    $region33: #{tpu_custom_call.1} parent=1 // pred_fallthru
      _
    // Predicated region
    $region34: #{tpu_custom_call.1} parent=1 // pred_check
      _
    $region35: #{tpu_custom_call.1} parent=1 // pred_check_branch
      %294 = sbr.rel (0) target = $region37
    $region36: #{tpu_custom_call.1} parent=1 // pred_region
      %295 = dma.done [#allocation5], 128
    $region37: #{tpu_custom_call.1} parent=1 // pred_fallthru
      _
    %296 = vsyncpa [#allocation4], 1
    %297 = vsyncpa [#allocation8], 1
    %298 = vsyncpa [#allocation5], 1
    %299 = vsyncpa [#allocation6], 1

</llo_original>
